<compile_context>
chip_gen: v7x
topology: tpu7x:2x2x1
jax: 0.10.0
libtpu: 0.0.40
codegen_flags: <defaults>
</compile_context>

<pallas_src>
import numpy as np
import jax
import jax.numpy as jnp
from jax.experimental import pallas as pl
from jax.experimental.pallas import tpu as pltpu


TILE = 1024                       # lanes per grid step; power of two, multiple of 128
assert TILE & (TILE - 1) == 0 and TILE % 128 == 0

_ROLL_MATCHES_JNP = None          # lazily probed pltpu.roll rotation convention


def _probe_roll_convention():
    """One-time probe of pltpu.roll's rotation direction on this backend.

    jnp.roll convention: element at index i moves to (i + shift) % n, i.e.
    out[0] of roll(arange(128), 1) is 127.  The compaction below only needs
    "pull the lane `step` to the right into this lane", so we derive the
    correct positive rotation amount from one tiny compiled kernel instead of
    hard-coding a convention.
    """
    global _ROLL_MATCHES_JNP
    if _ROLL_MATCHES_JNP is not None:
        return _ROLL_MATCHES_JNP

    def probe_kernel(x_ref, o_ref):
        o_ref[...] = pltpu.roll(x_ref[...], 1, 1)

    x = jnp.arange(128, dtype=jnp.int32).reshape(1, 128)
    y = pl.pallas_call(
        probe_kernel, out_shape=jax.ShapeDtypeStruct((1, 128), jnp.int32))(x)
    first = int(jax.device_get(y)[0, 0])
    assert first in (127, 1), f"unexpected pltpu.roll behaviour: out[0]={first}"
    _ROLL_MATCHES_JNP = (first == 127)
    return _ROLL_MATCHES_JNP


def _pull_right(v, step, tile):
    """out[j] = v[(j + step) % tile] -- bring the lane `step` to the right into j."""
    amt = (tile - step) if _ROLL_MATCHES_JNP else step
    return pltpu.roll(v, amt, 1)


def _pull_left(v, step, tile):
    """out[j] = v[(j - step) % tile]."""
    amt = step if _ROLL_MATCHES_JNP else (tile - step)
    return pltpu.roll(v, amt, 1)


def _compact_tile_kernel(n_ref, species_ref, chunk_ref):
    """Stable stream-compaction of one (1, TILE) tile, entirely in lane layout.

    n_ref:       (1,)      int32 SMEM -- true (unpadded) length of the species vector
    species_ref: (1, TILE) int32 VMEM -- pipelined input block
    chunk_ref:   (1, TILE) int32 VMEM -- pipelined output block; kept entries at
                 the front (original order), every other lane backfilled with -1
    """
    t = pl.program_id(0)
    tile = species_ref.shape[1]
    nbits = (tile - 1).bit_length()

    s = species_ref[...]                                        # (1, TILE) int32
    lane = jax.lax.broadcasted_iota(jnp.int32, (1, tile), 1)

    # Fold the tail padding into the kernel: lanes whose *global* index is past
    # the true length are treated as padding, so the caller never has to write
    # -1s into the padded buffer with a device-side pre-pass.
    in_range = (lane + t * tile) < n_ref[0]
    mask = jnp.logical_and(s != -1, in_range)                   # keep this lane?
    maski = mask.astype(jnp.int32)

    # Inclusive prefix-sum of the keep-mask (Hillis-Steele scan: log2(TILE)
    # roll + select + add steps; wrapped lanes are masked off).
    csum = maski
    for b in range(nbits):
        step = 1 << b
        prev = _pull_left(csum, step, tile)
        csum = csum + jnp.where(lane >= step, prev, 0)

    # csum is monotone, so its max IS its last lane == number of kept entries
    # in this tile (reuses the scan; no second pass over the raw mask).
    valid = jnp.max(csum, axis=1, keepdims=True)                # (1, 1) int32

    # Left-move distance of every kept lane.  Stable compaction => distances
    # are monotone non-decreasing across kept lanes, so the bitwise shift
    # scheme below never collides.  Invalid / padding lanes get dist = 0: they
    # never move and are never taken.
    dist = jnp.where(mask, lane - (csum - 1), 0)
    val = jnp.where(mask, s, -1)

    # log2(TILE)-step shift compaction, LSB -> MSB: at step b a lane takes the
    # element 2**b to its right iff that element still has bit b set in its
    # remaining move distance.  A lane whose element moved away with nothing
    # incoming becomes stale and its distance is forced to 0 so the duplicate
    # never moves again (it gets overwritten or masked by the tail backfill).
    for b in range(nbits):
        step = 1 << b
        inc_val = _pull_right(val, step, tile)
        inc_dist = _pull_right(dist, step, tile)
        take = (inc_dist & step) != 0
        leave = (dist & step) != 0
        val = jnp.where(take, inc_val, val)
        dist = jnp.where(take, inc_dist - step, jnp.where(leave, 0, dist))

    # Backfill stale duplicates / padding with the module's drop sentinel so
    # the host stitch is a single vectorized `flat[flat != -1]`.
    chunk_ref[...] = jnp.where(lane < valid, val, -1)


@jax.jit
def _compact_device_jit(n, species_padded):
    num_tiles = species_padded.shape[1] // TILE
    grid_spec = pltpu.PrefetchScalarGridSpec(
        num_scalar_prefetch=1,
        grid=(num_tiles,),
        in_specs=[pl.BlockSpec((1, TILE), lambda t, n_ref: (0, t))],
        out_specs=pl.BlockSpec((1, TILE), lambda t, n_ref: (0, t)),
    )
    return pl.pallas_call(
        _compact_tile_kernel,
        grid_spec=grid_spec,
        out_shape=jax.ShapeDtypeStruct(species_padded.shape, jnp.int32),
        # Tiles are fully independent (disjoint output blocks, no resident
        # state), so the grid axis can be split across v7x's two TensorCores.
        compiler_params=pltpu.CompilerParams(
            dimension_semantics=("parallel",)),
    )(n, species_padded)


def _bucketed_num_tiles(n):
    """Power-of-two tile count so varying molecule sizes hit few compiles."""
    nt = max(1, -(-n // TILE))
    return 1 << (nt - 1).bit_length()


def compact_species(species_np):
    """Drop the -1 padding of a 1D int species vector on the TPU.

    Returns a 1D np.int32 array of the kept atomic numbers, original order.
    """
    _probe_roll_convention()
    species_np = np.asarray(species_np, dtype=np.int32).reshape(-1)
    n = int(species_np.shape[0])
    n_pad = _bucketed_num_tiles(n) * TILE
    # Host-side staging into the bucketed buffer: the pad values are irrelevant
    # (the kernel masks global index >= n), so padding rides along the single
    # host->device transfer instead of costing a device-side pad pre-pass.
    padded = np.full((1, n_pad), -1, dtype=np.int32)
    if n:
        padded[0, :n] = species_np
    chunks = _compact_device_jit(jnp.asarray([n], dtype=jnp.int32),
                                 jnp.asarray(padded))
    jax.block_until_ready(chunks)
    flat = np.asarray(jax.device_get(chunks)).reshape(-1)
    # Per-tile compacted segments are separated only by -1 backfill, so one
    # vectorized filter stitches them back together in order.
    return flat[flat != -1]


class NumbersConvert:
    """JAX/Pallas port of torchani's _NumbersConvert (forward semantics preserved)."""

    def __init__(self, symbol_dict):
        self.symbol_dict = dict(symbol_dict)
        max_z = max(self.symbol_dict, default=-1)
        # Vectorized int -> chemical-symbol lookup table for the host stitch.
        self._table = np.array(
            [self.symbol_dict.get(z) for z in range(max_z + 1)], dtype=object)
        self._known = np.array(
            [z in self.symbol_dict for z in range(max_z + 1)], dtype=bool)

    def __call__(self, species):
        species_np = np.asarray(species)
        assert species_np.ndim == 1, "Only 1D tensors supported"
        vals = compact_species(species_np)
        if vals.size == 0:
            return []
        in_range = (vals >= 0) & (vals < self._known.size)
        ok = np.zeros(vals.shape, dtype=bool)
        ok[in_range] = self._known[vals[in_range]]
        if not ok.all():
            raise KeyError(int(vals[~ok][0]))  # same failure mode as the dict lookup
        # TODO(synk): building a Python List[str] of chemical symbols has no Pallas
        # equivalent; this vectorized object-table gather is host glue over the
        # kernel's compacted output.
        return self._table[vals].tolist()

    def __len__(self):
        return len(self.symbol_dict)


if __name__ == "__main__":
    key = jax.random.PRNGKey(0)
    symbol_dict = {1: "H", 6: "C", 7: "N", 8: "O", 16: "S"}
    elements = np.array(sorted(symbol_dict.keys()), dtype=np.int32)
    converter = NumbersConvert(symbol_dict)

    def make_species(k, n):
        k1, k2 = jax.random.split(k)
        idx = jax.random.randint(k1, (n,), 0, elements.shape[0])
        raw = jnp.asarray(elements)[idx]
        pad = jax.random.bernoulli(k2, p=0.3, shape=(n,))
        return jnp.where(pad, jnp.int32(-1), raw).astype(jnp.int32)

    keys = jax.random.split(key, 3)
    # 8: tiny; 600: partial tile; 3000: multiple (parallel) grid steps and a
    # second bucketed shape (4 tiles), exercising the recompile bucketing.
    for k, n in zip(keys, (8, 600, 3000)):
        species = make_species(k, n)
        sp_np = np.asarray(species)

        # Run the compaction kernel and block on its device output.
        compacted = compact_species(sp_np)

        out = converter(species)

        # Pure-numpy reference of the module's forward semantics.
        ref_vals = sp_np[sp_np != -1]
        ref = [symbol_dict[int(x)] for x in ref_vals]
        assert np.array_equal(compacted, ref_vals), (n, compacted[:8], ref_vals[:8])
        assert out == ref, (n, out[:8], ref[:8])

    print("KERNEL_OK")
</pallas_src>

<mosaic_0001>
module attributes {stable_mosaic.version = 11 : i64} {
  func.func @probe_kernel(%arg0: memref<1x128xi32, #tpu.memory_space<vmem>>, %arg1: memref<1x128xi32, #tpu.memory_space<vmem>>) attributes {dimension_semantics = [], scalar_prefetch = 0 : i64, scratch_operands = 0 : i64, tpu.core_type = #tpu.core_type<tc>} {
    %c0 = arith.constant 0 : index
    %c0_0 = arith.constant 0 : index
    %0 = vector.load %arg0[%c0, %c0_0] : memref<1x128xi32, #tpu.memory_space<vmem>>, vector<1x128xi32>
    %c1_i32 = arith.constant 1 : i32
    %1 = tpu.dynamic_rotate %0 by %c1_i32 dim 1 : vector<1x128xi32>, i32 -> vector<1x128xi32>
    %c0_1 = arith.constant 0 : index
    %c0_2 = arith.constant 0 : index
    %2 = vector.load %arg1[%c0_1, %c0_2] : memref<1x128xi32, #tpu.memory_space<vmem>>, vector<1x128xi32>
    tpu.vector_store %arg1[%c0_1, %c0_2], %1 {strides = array<i32>} : memref<1x128xi32, #tpu.memory_space<vmem>>, vector<1x128xi32>,
    return
  }
}

</mosaic_0001>

<llo_original>
// kernel: tpu_custom_call.1
$region0: #{tpu_custom_call.1}
  #allocation0 [shape = 'u32[]', space=smem, size = 0x4, offset = 0x4, fixed_abs, tag = 'smem constant byte address 0x4 - core index']
  #allocation1 [shape = 'u32[144,128]{1,0:T(1,128)}', space=vmem, size = 0x12000, scoped, tag = 'internal scratch']
  %s0 = inlined_call_operand.hbm [shape: s32[1,128], index: 0, kind: input, shape index: {}]
  %s1 = inlined_call_operand.hbm [shape: s32[1,128], index: 1, kind: output, shape index: {}]
  %s2 = sld [smem:[#allocation0]]
  $region18: #{tpu_custom_call.1} parent=0
    _
  %s4 = ssub.s32 1, %s2
  %s5 = scalar_select 0, %s4, %s2
  $region1: #{tpu_custom_call.1} parent=0
    #allocation2 [shape = 'u8[512]{0}', space=vmem, size = 0x400, scoped, tag = 'input window, operand 0, single buffered']
    #allocation3 [shape = 's32[1]{0}', space=sflag, size = 0x4, scoped, tag = 'scoped memory for tpu_custom_call.1']
    #allocation4 [shape = 's32[1]{0}', space=sflag, size = 0x4, scoped, tag = 'scoped memory for tpu_custom_call.1']
    #allocation5 [shape = 'u8[512]{0}', space=vmem, size = 0x400, scoped, tag = 'output window, operand 0, single buffered']
    %6 = vsyncpa [#allocation3], 0
    %7 = vsyncpa [#allocation4], 0
    // Predicated region
    $region2: #{tpu_custom_call.1} parent=1 // pred_check
      _
    $region3: #{tpu_custom_call.1} parent=1 // pred_check_branch
      %9 = sbr.rel (0) target = $region5
    $region4: #{tpu_custom_call.1} parent=1 // pred_region
      %s11 = ssub.s32 16, 16
      %12 = vsyncadd [#allocation3], %s11
      %s14 = sshll.u32 [#allocation2], 4
      %s15 = int_to_ptr.vmem [resolvable:$true] %s14
      %17 = dma.hbm_to_vmem [thread:$0]  %s0, 16, %s15, [#allocation3]
    $region5: #{tpu_custom_call.1} parent=1 // pred_fallthru
      _
    // Predicated region
    $region6: #{tpu_custom_call.1} parent=1 // pred_check
      _
    $region7: #{tpu_custom_call.1} parent=1 // pred_check_branch
      %19 = sbr.rel (0) target = $region9
    $region8: #{tpu_custom_call.1} parent=1 // pred_region
      %20 = dma.done [#allocation3], 16
    $region9: #{tpu_custom_call.1} parent=1 // pred_fallthru
      _
    %v21 = vld [vmem:[#allocation2] sm:$0x1]
    %22 = vrot.lane.b32.xlu0 %v21, 1
    %v23 = vpop.permute.xlu0 %22
    %24 = vst [vmem:[#allocation5] sm:$0x1] %v23
    // Predicated region
    $region10: #{tpu_custom_call.1} parent=1 // pred_check
      _
    $region11: #{tpu_custom_call.1} parent=1 // pred_check_branch
      %26 = sbr.rel (0) target = $region13
    $region12: #{tpu_custom_call.1} parent=1 // pred_region
      %s28 = ssub.s32 16, 16
      %29 = vsyncadd [#allocation4], %s28
      %s31 = sshll.u32 [#allocation5], 4
      %s32 = int_to_ptr.vmem [resolvable:$true] %s31
      %34 = dma.vmem_to_hbm [thread:$0]  %s32, 16, %s1, [#allocation4]
    $region13: #{tpu_custom_call.1} parent=1 // pred_fallthru
      _
    // Predicated region
    $region14: #{tpu_custom_call.1} parent=1 // pred_check
      _
    $region15: #{tpu_custom_call.1} parent=1 // pred_check_branch
      %36 = sbr.rel (0) target = $region17
    $region16: #{tpu_custom_call.1} parent=1 // pred_region
      %37 = dma.done [#allocation4], 16
    $region17: #{tpu_custom_call.1} parent=1 // pred_fallthru
      _
    %38 = vsyncpa [#allocation3], 1
    %39 = vsyncpa [#allocation4], 1

</llo_original>
